<compile_context>
chip_gen: v7x
topology: tpu7x:2x2x1
jax: 0.10.0
libtpu: 0.0.40
codegen_flags: <defaults>
</compile_context>

<pallas_src>
import functools
import math

import jax
import jax.numpy as jnp
from jax.experimental import pallas as pl
from jax.experimental.pallas import tpu as pltpu

_LANE = 128
_SUBLANE = 8
# Cap on one output block in VMEM (pipeline double-buffers -> 2x this).
_OUT_BLOCK_BYTES_CAP = 4 * 1024 * 1024


def _round_up(n: int, m: int) -> int:
    return ((n + m - 1) // m) * m


def _sinusoidal_kernel(x_ref, freq_ref, phase_ref, o_ref, *, tb):
    """One batch tile.

    x_ref     : (Bp, 1)  f32  timesteps, VMEM-resident across the whole grid
    freq_ref  : (1, Wp)  f32  scale * exp(-log(1e4)/(half-1) * j)   (0 in pad cols)
    phase_ref : (1, Wp)  f32  0 for the sin half, pi/2 for the cos half
    o_ref     : (tb, Wp)      sin(x*freq + phase)  ->  [sin | cos] layout
    """
    start = pl.multiple_of(pl.program_id(0) * tb, tb)      # tb is a multiple of 8
    x = x_ref[pl.ds(start, tb), :]                          # (tb, 1)
    z = x * freq_ref[...] + phase_ref[...]                  # (tb, Wp)
    o_ref[...] = jnp.sin(z).astype(o_ref.dtype)             # single lane-dense store


def sinusoidal_embedding(x, size: int, scale: float = 1.0, *,
                         block_rows: int = 1024, out_dtype=jnp.float32):
    """Pallas equivalent of SinusoidalEmbedding.forward.

    x:    array of timesteps / positions (any shape; embedding appended as last axis).
    size: embedding size (output width = 2 * (size // 2), == size for even size).
    """
    x = jnp.asarray(x, jnp.float32)
    lead_shape = x.shape
    x = x.reshape(-1)
    B = x.shape[0]

    half = size // 2
    assert half >= 2, "size must be >= 4"
    width = 2 * half
    Wp = _round_up(width, _LANE)          # lane-dense (padded) output width

    # ---- batch-tile selection (VMEM guard + >=2 grid steps for v7x) -------
    row_bytes = Wp * 4
    vmem_rows = max(_SUBLANE,
                    (_OUT_BLOCK_BYTES_CAP // row_bytes) // _SUBLANE * _SUBLANE)
    tb = _round_up(min(block_rows, _round_up(B, _SUBLANE)), _SUBLANE)
    tb = min(tb, vmem_rows)
    if B > _SUBLANE:                       # keep >= 2 grid steps (v7x: 2 TCs)
        tb = min(tb, _round_up(-(-B // 2), _SUBLANE))
    Bp = _round_up(B, tb)
    if Bp != B:
        x = jnp.pad(x, (0, Bp - B))
    x2 = x.reshape(Bp, 1)

    # ---- per-column tables, built once in the wrapper ----------------------
    coef = math.log(10000.0) / (half - 1)
    j = jnp.arange(Wp, dtype=jnp.float32)
    jj = jnp.where(j < half, j, j - half)                         # 0..half-1 twice
    freq = jnp.where(j < width, float(scale) * jnp.exp(-coef * jj),
                     jnp.float32(0.0)).reshape(1, Wp).astype(jnp.float32)
    phase = jnp.where((j >= half) & (j < width), jnp.float32(math.pi / 2.0),
                      jnp.float32(0.0)).reshape(1, Wp).astype(jnp.float32)

    kernel = functools.partial(_sinusoidal_kernel, tb=tb)
    grid = (Bp // tb,)

    cost = pl.CostEstimate(
        flops=2 * Bp * Wp,                                   # mul + add
        transcendentals=Bp * Wp,                             # one sin per element
        bytes_accessed=4 * Bp + 8 * Wp + Bp * Wp * jnp.dtype(out_dtype).itemsize,
    )

    out = pl.pallas_call(
        kernel,
        out_shape=jax.ShapeDtypeStruct((Bp, Wp), out_dtype),
        grid=grid,
        in_specs=[
            pl.BlockSpec((Bp, 1), lambda i: (0, 0)),    # resident timesteps
            pl.BlockSpec((1, Wp), lambda i: (0, 0)),    # resident freq table
            pl.BlockSpec((1, Wp), lambda i: (0, 0)),    # resident phase table
        ],
        out_specs=pl.BlockSpec((tb, Wp), lambda i: (i, 0)),
        compiler_params=pltpu.CompilerParams(
            dimension_semantics=("parallel",),          # shard batch tiles across TCs
            vmem_limit_bytes=32 * 1024 * 1024,
        ),
        cost_estimate=cost,
    )(x2, freq, phase)

    out = out[:B, :width]
    return out.reshape(lead_shape + (width,))


def _reference(x, size: int, scale: float = 1.0):
    """Pure-JAX mirror of the PyTorch module (for verification)."""
    x = jnp.asarray(x, jnp.float32) * scale
    half = size // 2
    e = math.log(10000.0) / (half - 1)
    f = jnp.exp(-e * jnp.arange(half, dtype=jnp.float32))
    emb = x[..., None] * f
    return jnp.concatenate([jnp.sin(emb), jnp.cos(emb)], axis=-1)


if __name__ == "__main__":
    key = jax.random.PRNGKey(0)

    # small, module-consistent shapes: a 1-D batch of timesteps -> (B, size)
    B, size, scale = 200, 128, 25.0
    x = jax.random.uniform(key, (B,), jnp.float32) * 2.0 - 1.0

    # block_rows=64 exercises a multi-step pipelined grid (grid=(4,)) plus the
    # pad-to-tile / slice-back path (B=200 -> Bp=256).
    out = jax.block_until_ready(sinusoidal_embedding(x, size, scale, block_rows=64))
    ref = _reference(x, size, scale)
    assert out.shape == ref.shape == (B, size)
    assert jnp.allclose(out, ref, atol=1e-4, rtol=1e-4), "mismatch vs reference"

    # default tiling (auto-capped to a 2-step grid) and default scale=1.0
    out1 = jax.block_until_ready(sinusoidal_embedding(x, size))
    assert jnp.allclose(out1, _reference(x, size), atol=1e-4, rtol=1e-4)

    # non-128-multiple width: pad-to-lane-dense + slice path (size=96 -> Wp=128)
    out2 = jax.block_until_ready(sinusoidal_embedding(x, 96, scale))
    assert out2.shape == (B, 96)
    assert jnp.allclose(out2, _reference(x, 96, scale), atol=1e-4, rtol=1e-4)

    print("KERNEL_OK")
</pallas_src>

<mosaic_0001>
module attributes {stable_mosaic.version = 11 : i64} {
  func.func @_sinusoidal_kernel(%arg0: i32, %arg1: memref<256x1xf32, #tpu.memory_space<vmem>>, %arg2: memref<1x128xf32, #tpu.memory_space<vmem>>, %arg3: memref<1x128xf32, #tpu.memory_space<vmem>>, %arg4: memref<64x128xf32, #tpu.memory_space<vmem>>) attributes {dimension_semantics = [#tpu.dimension_semantics<parallel>], iteration_bounds = array<i64: 4>, scalar_prefetch = 0 : i64, scratch_operands = 0 : i64, tpu.core_type = #tpu.core_type<tc>, window_params = [{pipeline_mode = #tpu.pipeline_mode<synchronous>, transform_indices = @transform_0, window_bounds = array<i64: 256, 1>}, {pipeline_mode = #tpu.pipeline_mode<synchronous>, transform_indices = @transform_1, window_bounds = array<i64: 1, 128>}, {pipeline_mode = #tpu.pipeline_mode<synchronous>, transform_indices = @transform_2, window_bounds = array<i64: 1, 128>}, {transform_indices = @transform_3, window_bounds = array<i64: 64, 128>}]} {
    %c64_i32 = arith.constant 64 : i32
    %0 = arith.muli %arg0, %c64_i32 : i32
    %1 = tpu.assume_multiple %0, 64 : i32
    %2 = arith.index_cast %1 : i32 to index
    %c0 = arith.constant 0 : index
    %3 = vector.load %arg1[%2, %c0] : memref<256x1xf32, #tpu.memory_space<vmem>>, vector<64x1xf32>
    %c0_0 = arith.constant 0 : index
    %c0_1 = arith.constant 0 : index
    %4 = vector.load %arg2[%c0_0, %c0_1] : memref<1x128xf32, #tpu.memory_space<vmem>>, vector<1x128xf32>
    %5 = vector.broadcast %3 : vector<64x1xf32> to vector<64x128xf32>
    %6 = vector.broadcast %4 : vector<1x128xf32> to vector<64x128xf32>
    %7 = arith.mulf %5, %6 : vector<64x128xf32>
    %c0_2 = arith.constant 0 : index
    %c0_3 = arith.constant 0 : index
    %8 = vector.load %arg3[%c0_2, %c0_3] : memref<1x128xf32, #tpu.memory_space<vmem>>, vector<1x128xf32>
    %9 = vector.broadcast %8 : vector<1x128xf32> to vector<64x128xf32>
    %10 = arith.addf %7, %9 : vector<64x128xf32>
    %11 = math.sin %10 : vector<64x128xf32>
    %c0_4 = arith.constant 0 : index
    %c0_5 = arith.constant 0 : index
    %12 = vector.load %arg4[%c0_4, %c0_5] : memref<64x128xf32, #tpu.memory_space<vmem>>, vector<64x128xf32>
    tpu.vector_store %arg4[%c0_4, %c0_5], %11 {strides = array<i32>} : memref<64x128xf32, #tpu.memory_space<vmem>>, vector<64x128xf32>,
    return
  }
  func.func @transform_0(%arg0: i32) -> (i32, i32) {
    %c0_i32 = arith.constant 0 : i32
    %c0_i32_0 = arith.constant 0 : i32
    %c0_i32_1 = arith.constant 0 : i32
    return %c0_i32, %c0_i32_0 : i32, i32
  }
  func.func @transform_1(%arg0: i32) -> (i32, i32) {
    %c0_i32 = arith.constant 0 : i32
    %c0_i32_0 = arith.constant 0 : i32
    %c0_i32_1 = arith.constant 0 : i32
    return %c0_i32, %c0_i32_0 : i32, i32
  }
  func.func @transform_2(%arg0: i32) -> (i32, i32) {
    %c0_i32 = arith.constant 0 : i32
    %c0_i32_0 = arith.constant 0 : i32
    %c0_i32_1 = arith.constant 0 : i32
    return %c0_i32, %c0_i32_0 : i32, i32
  }
  func.func @transform_3(%arg0: i32) -> (i32, i32) {
    %c0_i32 = arith.constant 0 : i32
    %c0_i32_0 = arith.constant 0 : i32
    return %arg0, %c0_i32 : i32, i32
  }
}

</mosaic_0001>

<llo_original>
// kernel: tpu_custom_call.1
$region0: #{tpu_custom_call.1}
  #allocation0 [shape = 'u32[]', space=smem, size = 0x4, offset = 0x4, fixed_abs, tag = 'smem constant byte address 0x4 - core index']
  #allocation1 [shape = 'u32[144,128]{1,0:T(1,128)}', space=vmem, size = 0x12000, scoped, tag = 'internal scratch']
  %s0 = inlined_call_operand.vmem [shape: f32[256,1], index: 0, kind: input, shape index: {}]
  %s1 = inlined_call_operand.vmem [shape: f32[1,128], index: 1, kind: input, shape index: {}]
  %s2 = inlined_call_operand.vmem [shape: f32[1,128], index: 2, kind: input, shape index: {}]
  %s3 = inlined_call_operand.hbm [shape: f32[256,128], index: 3, kind: output, shape index: {}]
  %s4 = sld [smem:[#allocation0]]
  $region45: #{tpu_custom_call.1} parent=0
    _
  %s6 = ssub.s32 1, %s4
  %s7 = scalar_select 0, %s6, %s4
  $region1: #{tpu_custom_call.1} parent=0
    #allocation2 [shape = 'u8[65536]{0}', space=vmem, size = 0x10000, scoped, tag = 'output window, operand 0']
    #allocation3 [shape = 's32[2]{0}', space=sflag, size = 0x8, scoped, tag = 'scoped memory for tpu_custom_call.1']
    %8 = vsyncpa [#allocation3], 0
    %s9 = scalar_lea.sflag [#allocation3], 1
    %10 = vsyncpa %s9, 0
    loop: start=0, step=1, limit=6
    $region2: #{tpu_custom_call.1} parent=1 // loop_pre_header
      _
    $region3: #{tpu_custom_call.1} parent=1 // loop_header
      %s12 = sphi 0, %s16
      %p13 = scmp.ge.s32.totalorder %s12, 6
      %s20 = sphi 0, %s20
      %s22 = sphi 0, %s20
      %s23 = sphi 0, %s22
      %s37 = sphi 0, %s23
      %s41 = sphi 0, %s41
      %s43 = sphi 0, %s41
      %s44 = sphi 0, %s43
      %s58 = sphi 0, %s44
      %s62 = sphi 0, %s62
      %s64 = sphi 0, %s62
      %s65 = sphi 0, %s64
      %s79 = sphi 0, %s65
      %s85 = sphi 0, %s87
      %s88 = sphi 0, %s85
      %s89 = sphi 0, %s88
      %s105 = sphi 0, %s89
    $region4: #{tpu_custom_call.1} parent=1 // loop_header_branch
      %15 = sbr.rel (%p13) target = $region8
    $region5: #{tpu_custom_call.1} parent=1 // loop_body
      %s17 = ssub.s32 %s12, 1
      %s18 = ssub.s32 %s12, 2
      %s19 = sadd.s32 %s12, 1
      %s21 = sadd.s32 %s20, 1
      %p24 = scmp.eq.s32.totalorder %s12, 3
      %p25 = scmp.ne.s32.totalorder %s20, %s22
      %p26 = scmp.eq.s32.totalorder %s12, 0
      %p27 = por %p25, %p26
      %p28 = scmp.ne.s32.totalorder %s20, %s22
      %p29 = scmp.eq.s32.totalorder %s17, 3
      %p30 = por %p28, %p29
      %p31 = scmp.ne.s32.totalorder %s22, %s23
      %p32 = scmp.eq.s32.totalorder %s17, 0
      %p33 = por %p31, %p32
      %p34 = scmp.ne.s32.totalorder %s22, %s23
      %p35 = scmp.eq.s32.totalorder %s18, 3
      %p36 = por %p34, %p35
      %p38 = scmp.ne.s32.totalorder %s23, %s37
      %p39 = scmp.eq.s32.totalorder %s18, 0
      %p40 = por %p38, %p39
      %s42 = sadd.s32 %s41, 1
      %p45 = scmp.eq.s32.totalorder %s12, 3
      %p46 = scmp.ne.s32.totalorder %s41, %s43
      %p47 = scmp.eq.s32.totalorder %s12, 0
      %p48 = por %p46, %p47
      %p49 = scmp.ne.s32.totalorder %s41, %s43
      %p50 = scmp.eq.s32.totalorder %s17, 3
      %p51 = por %p49, %p50
      %p52 = scmp.ne.s32.totalorder %s43, %s44
      %p53 = scmp.eq.s32.totalorder %s17, 0
      %p54 = por %p52, %p53
      %p55 = scmp.ne.s32.totalorder %s43, %s44
      %p56 = scmp.eq.s32.totalorder %s18, 3
      %p57 = por %p55, %p56
      %p59 = scmp.ne.s32.totalorder %s44, %s58
      %p60 = scmp.eq.s32.totalorder %s18, 0
      %p61 = por %p59, %p60
      %s63 = sadd.s32 %s62, 1
      %p66 = scmp.eq.s32.totalorder %s12, 3
      %p67 = scmp.ne.s32.totalorder %s62, %s64
      %p68 = scmp.eq.s32.totalorder %s12, 0
      %p69 = por %p67, %p68
      %p70 = scmp.ne.s32.totalorder %s62, %s64
      %p71 = scmp.eq.s32.totalorder %s17, 3
      %p72 = por %p70, %p71
      %p73 = scmp.ne.s32.totalorder %s64, %s65
      %p74 = scmp.eq.s32.totalorder %s17, 0
      %p75 = por %p73, %p74
      %p76 = scmp.ne.s32.totalorder %s64, %s65
      %p77 = scmp.eq.s32.totalorder %s18, 3
      %p78 = por %p76, %p77
      %p80 = scmp.ne.s32.totalorder %s65, %s79
      %p81 = scmp.eq.s32.totalorder %s18, 0
      %p82 = por %p80, %p81
      %s83 = ssub.s32 %s12, %s19
      %p84 = scmp.eq.s32.totalorder %s83, 0
      %s86 = sadd.s32 %s85, 1
      %s87 = scalar_select %p84, %s85, %s86
      %p90 = pneg %p84
      %p91 = scmp.eq.s32.totalorder %s12, 3
      %p92 = por %p90, %p91
      %p93 = scmp.ne.s32.totalorder %s85, %s88
      %p94 = scmp.eq.s32.totalorder %s12, 0
      %p95 = por %p93, %p94
      %p96 = scmp.ne.s32.totalorder %s85, %s88
      %p97 = scmp.eq.s32.totalorder %s17, 3
      %p98 = por %p96, %p97
      %p99 = scmp.ne.s32.totalorder %s88, %s89
      %p100 = scmp.eq.s32.totalorder %s17, 0
      %p101 = por %p99, %p100
      %p102 = scmp.ne.s32.totalorder %s88, %s89
      %p103 = scmp.eq.s32.totalorder %s18, 3
      %p104 = por %p102, %p103
      %p106 = scmp.ne.s32.totalorder %s89, %s105
      %p107 = scmp.eq.s32.totalorder %s18, 0
      %p108 = por %p106, %p107
      %p109 = scmp.le.s32.totalorder 1, %s12
      %p110 = scmp.lt.s32.totalorder %s12, 5
      %p111 = pnand %p109, %p110
      %p112 = pneg %p111
      // Predicated region
      $region9: #{tpu_custom_call.1} parent=5 // pred_check
        _
      $region10: #{tpu_custom_call.1} parent=5 // pred_check_branch
        %114 = sbr.rel (%p111) target = $region12
      $region11: #{tpu_custom_call.1} parent=5 // pred_region
        %s115 = ssub.s32 %s12, 1
        // Predicated region
        $region13: #{tpu_custom_call.1} parent=11 // pred_check
          %p116 = pneg %p33
        $region14: #{tpu_custom_call.1} parent=11 // pred_check_branch
          %118 = sbr.rel (%p116) target = $region16
        $region15: #{tpu_custom_call.1} parent=11 // pred_region
          _
        $region16: #{tpu_custom_call.1} parent=11 // pred_fallthru
          _
        // Predicated region
        $region17: #{tpu_custom_call.1} parent=11 // pred_check
          %p119 = pneg %p54
        $region18: #{tpu_custom_call.1} parent=11 // pred_check_branch
          %121 = sbr.rel (%p119) target = $region20
        $region19: #{tpu_custom_call.1} parent=11 // pred_region
          _
        $region20: #{tpu_custom_call.1} parent=11 // pred_fallthru
          _
        // Predicated region
        $region21: #{tpu_custom_call.1} parent=11 // pred_check
          %p122 = pneg %p75
        $region22: #{tpu_custom_call.1} parent=11 // pred_check_branch
          %124 = sbr.rel (%p122) target = $region24
        $region23: #{tpu_custom_call.1} parent=11 // pred_region
          _
        $region24: #{tpu_custom_call.1} parent=11 // pred_fallthru
          _
      $region12: #{tpu_custom_call.1} parent=5 // pred_fallthru
        _
      %p125 = scmp.lt.s32.totalorder %s12, 4
      // Predicated region
      $region25: #{tpu_custom_call.1} parent=5 // pred_check
        %p126 = pneg %p125
      $region26: #{tpu_custom_call.1} parent=5 // pred_check_branch
        %128 = sbr.rel (%p126) target = $region28
      $region27: #{tpu_custom_call.1} parent=5 // pred_region
        _
      $region28: #{tpu_custom_call.1} parent=5 // pred_fallthru
        _
      %p129 = scmp.le.s32.totalorder 1, %s12
      %p130 = scmp.lt.s32.totalorder %s12, 5
      %p131 = pnand %p129, %p130
      %p132 = pneg %p131
      // Predicated region
      $region29: #{tpu_custom_call.1} parent=5 // pred_check
        _
      $region30: #{tpu_custom_call.1} parent=5 // pred_check_branch
        %134 = sbr.rel (%p131) target = $region32
      $region31: #{tpu_custom_call.1} parent=5 // pred_region
        %s135 = ssub.s32 %s12, 1
        %p136 = pneg %p33
        %p137 = pneg %p30
        %p138 = pneg %p54
        %p139 = pneg %p51
        %p140 = pneg %p75
        %p141 = pneg %p72
        %p142 = pneg %p101
        %p143 = pneg %p98
        %s144 = sand.u32 %s88, 1
        %s145 = scalar_lea.sflag [#allocation3], %s144
        %s146 = sand.u32 %s88, 1
        %s147 = smul.addr %s146, 64
        %s148 = scalar_lea.vmem [#allocation2], %s147
        %s149 = smul.u32 8, %s17
        %s150 = smul.u32 %s17, 64
        %s151 = scalar_lea.vmem %s0, %s150
        %v152 = vld [vmem:[%s151] sm:$0xff]
        %v153 = vld [vmem:[%s151 + $0x8] sm:$0xff]
        %v154 = vld [vmem:[%s151 + $0x10] sm:$0xff]
        %v155 = vld [vmem:[%s151 + $0x18] sm:$0xff]
        %v156 = vld [vmem:[%s151 + $0x20] sm:$0xff]
        %v157 = vld [vmem:[%s151 + $0x28] sm:$0xff]
        %v158 = vld [vmem:[%s151 + $0x30] sm:$0xff]
        %v159 = vld [vmem:[%s151 + $0x38] sm:$0xff]
        %v160 = vld [vmem:[%s1] sm:$0x1]
        %162 = vset.pattern.permute.xlu0 0
        %163 = vperm.xlu0 %162, %v152
        %v164 = vpop.permute.xlu0 %163
        %167 = vset.pattern.permute.xlu0 0
        %168 = vperm.xlu0 %167, %v153
        %v169 = vpop.permute.xlu0 %168
        %172 = vset.pattern.permute.xlu0 0
        %173 = vperm.xlu0 %172, %v154
        %v174 = vpop.permute.xlu0 %173
        %177 = vset.pattern.permute.xlu0 0
        %178 = vperm.xlu0 %177, %v155
        %v179 = vpop.permute.xlu0 %178
        %182 = vset.pattern.permute.xlu0 0
        %183 = vperm.xlu0 %182, %v156
        %v184 = vpop.permute.xlu0 %183
        %187 = vset.pattern.permute.xlu0 0
        %188 = vperm.xlu0 %187, %v157
        %v189 = vpop.permute.xlu0 %188
        %192 = vset.pattern.permute.xlu0 0
        %193 = vperm.xlu0 %192, %v158
        %v194 = vpop.permute.xlu0 %193
        %197 = vset.pattern.permute.xlu0 0
        %198 = vperm.xlu0 %197, %v159
        %v199 = vpop.permute.xlu0 %198
        %v202 = vlaneseq
        %v203 = vshrl.u32 %v202, 7
        %v204 = vsub.s32 0, %v203
        %v205 = vrot.slane %v160, %v204
        %v207 = vmul.f32 %v164, %v205
        %v208 = vmul.f32 %v169, %v205
        %v209 = vmul.f32 %v174, %v205
        %v210 = vmul.f32 %v179, %v205
        %v211 = vmul.f32 %v184, %v205
        %v212 = vmul.f32 %v189, %v205
        %v213 = vmul.f32 %v194, %v205
        %v214 = vmul.f32 %v199, %v205
        %v215 = vld [vmem:[%s2] sm:$0x1]
        %v217 = vlaneseq
        %v218 = vshrl.u32 %v217, 7
        %v219 = vsub.s32 0, %v218
        %v220 = vrot.slane %v215, %v219
        %v222 = vadd.f32 %v207, %v220
        %v223 = vadd.f32 %v208, %v220
        %v224 = vadd.f32 %v209, %v220
        %v225 = vadd.f32 %v210, %v220
        %v226 = vadd.f32 %v211, %v220
        %v227 = vadd.f32 %v212, %v220
        %v228 = vadd.f32 %v213, %v220
        %v229 = vadd.f32 %v214, %v220
        %v230 = vand.u32 2147483647, %v222
        %vm231 = vcmp.le.f32.partialorder %v230, 0.7853982
        %vm232 = vcmp.lt.s32.totalorder %v222, 0
        %v233 = vand.u32 %v222, 2139095040
        %v234 = vshrl.u32 %v233, 23
        %v235 = vsub.s32 %v234, 127
        %v236 = vand.u32 2147483647, %v222
        %v237 = vand.u32 %v236, 8388607
        %v238 = vor.u32 %v237, 8388608
        %v239 = vsub.s32 0, %v238
        %v240 = vadd.s32 %v235, 1
        %vm241 = vcmp.gt.s32.totalorder %v240, 0
        %v242 = vsel %vm241, %v240, 0
        %v243 = vshrl.u32 %v242, 5
        %v244 = vand.u32 %v242, 31
        %v245 = vsub.s32 32, %v244
        %v246 = vshrl.u32 683565275, %v245
        %v247 = vshll.u32 683565275, %v244
        %v248 = vshrl.u32 2475754826, %v245
        %v249 = vor.u32 %v247, %v248
        %v250 = vshll.u32 2475754826, %v244
        %v251 = vshrl.u32 2131351028, %v245
        %v252 = vor.u32 %v250, %v251
        %v253 = vshll.u32 2131351028, %v244
        %v254 = vshrl.u32 2102212464, %v245
        %v255 = vor.u32 %v253, %v254
        %v256 = vshll.u32 2102212464, %v244
        %v257 = vshrl.u32 920167782, %v245
        %v258 = vor.u32 %v256, %v257
        %v259 = vshll.u32 920167782, %v244
        %v260 = vshrl.u32 1326507024, %v245
        %v261 = vor.u32 %v259, %v260
        %vm262 = vcmp.lt.s32.totalorder %v243, 1
        %vm263 = vcmp.lt.s32.totalorder %v243, 2
        %vm264 = vcmp.lt.s32.totalorder %v243, 3
        %vm265 = vcmp.lt.s32.totalorder %v243, 4
        %v266 = vsel %vm262, %v246, %v249
        %v267 = vsel %vm265, %v255, 2102212464
        %v268 = vsel %vm264, %v252, %v267
        %v269 = vsel %vm263, %v266, %v268
        %v270 = vsel %vm262, %v249, %v252
        %v271 = vsel %vm265, %v258, 920167782
        %v272 = vsel %vm264, %v255, %v271
        %v273 = vsel %vm263, %v270, %v272
        %v274 = vsel %vm262, %v252, %v255
        %v275 = vsel %vm265, %v261, 1326507024
        %v276 = vsel %vm264, %v258, %v275
        %v277 = vsel %vm263, %v274, %v276
        %v278 = vshll.u32 %v238, 8
        %v279 = vmul.u32.u64.compose %v278, %v277
        %v280 = vextract.low.u32 %v279
        %v281 = vextract.high.u32 %v279
        %v282 = vmul.u32.u64.compose %v278, %v273
        %v283 = vextract.low.u32 %v282
        %v284 = vextract.high.u32 %v282
        %v285 = vmul.u32 %v278, %v269
        %v286 = vadd.s32 %v281, %v283
        %vm287 = vc.u32 %v281, %v283
        %v288 = vadd.s32 %v284, 1
        %v289 = vsel %vm287, %v288, %v284
        %v290 = vadd.s32 %v285, %v289
        %v291 = vadd.s32 %v290, 536870912
        %v292 = vshrl.u32 %v291, 30
        %v293 = vshll.u32 %v292, 30
        %v294 = vsub.s32 %v290, %v293
        %vm295 = vcmp.lt.s32.totalorder %v294, 0
        %v296 = vsub.s32 0, %v294
        %v297 = vsel %vm295, %v296, %v294
        %v298 = vclz %v297
        %v299 = vsub.s32 %v298, 2
        %vm300 = vcmp.gt.s32.totalorder 0, %v299
        %v301 = vsel %vm300, 0, %v299
        %v302 = vsub.s32 32, %v301
        %v303 = vshll.u32 %v294, %v301
        %v304 = vshrl.u32 %v286, %v302
        %v305 = vor.u32 %v303, %v304
        %v306 = vsub.s32 4294967266, %v301
        %v307 = vadd.s32 %v306, 127
        %v308 = vshll.u32 %v307, 23
        %v309 = vor.u32 4788187, %v308
        %v310 = vand.u32 2147483647, %v309
        %v312 = vcvt.s32.f32 %v305
        %v313 = vmul.f32 %v312, %v310
        %v314 = vxor.u32 %v313, 2147483648
        %v315 = vsel %vm232, %v314, %v313
        %v316 = vsub.s32 4, %v292
        %v317 = vsel %vm232, %v316, %v292
        %v318 = vsel %vm231, %v222, %v315
        %v319 = vsel %vm231, 0, %v317
        %v320 = vcosq.f32.pop %v318
        %v321 = vsinq.f32.pop %v318
        %vm322 = vweird.f32 %v222
        %v323 = vadd.s32 %v319, 3
        %v324 = vand.u32 %v323, 3
        %vm325 = vcmp.lt.s32.totalorder %v324, 2
        %vm326 = vcmp.eq.s32.totalorder %v324, 0
        %v327 = vxor.u32 %v321, 2147483648
        %v328 = vsel %vm326, %v320, %v327
        %vm329 = vcmp.eq.s32.totalorder %v324, 2
        %v330 = vxor.u32 %v320, 2147483648
        %v331 = vsel %vm329, %v330, %v321
        %v332 = vsel %vm325, %v328, %v331
        %v333 = vsel %vm322, nan, %v332
        %v334 = vand.u32 2147483647, %v223
        %vm335 = vcmp.le.f32.partialorder %v334, 0.7853982
        %vm336 = vcmp.lt.s32.totalorder %v223, 0
        %v337 = vand.u32 %v223, 2139095040
        %v338 = vshrl.u32 %v337, 23
        %v339 = vsub.s32 %v338, 127
        %v340 = vand.u32 2147483647, %v223
        %v341 = vand.u32 %v340, 8388607
        %v342 = vor.u32 %v341, 8388608
        %v343 = vsub.s32 0, %v342
        %v344 = vadd.s32 %v339, 1
        %vm345 = vcmp.gt.s32.totalorder %v344, 0
        %v346 = vsel %vm345, %v344, 0
        %v347 = vshrl.u32 %v346, 5
        %v348 = vand.u32 %v346, 31
        %v349 = vsub.s32 32, %v348
        %v350 = vshrl.u32 683565275, %v349
        %v351 = vshll.u32 683565275, %v348
        %v352 = vshrl.u32 2475754826, %v349
        %v353 = vor.u32 %v351, %v352
        %v354 = vshll.u32 2475754826, %v348
        %v355 = vshrl.u32 2131351028, %v349
        %v356 = vor.u32 %v354, %v355
        %v357 = vshll.u32 2131351028, %v348
        %v358 = vshrl.u32 2102212464, %v349
        %v359 = vor.u32 %v357, %v358
        %v360 = vshll.u32 2102212464, %v348
        %v361 = vshrl.u32 920167782, %v349
        %v362 = vor.u32 %v360, %v361
        %v363 = vshll.u32 920167782, %v348
        %v364 = vshrl.u32 1326507024, %v349
        %v365 = vor.u32 %v363, %v364
        %vm366 = vcmp.lt.s32.totalorder %v347, 1
        %vm367 = vcmp.lt.s32.totalorder %v347, 2
        %vm368 = vcmp.lt.s32.totalorder %v347, 3
        %vm369 = vcmp.lt.s32.totalorder %v347, 4
        %v370 = vsel %vm366, %v350, %v353
        %v371 = vsel %vm369, %v359, 2102212464
        %v372 = vsel %vm368, %v356, %v371
        %v373 = vsel %vm367, %v370, %v372
        %v374 = vsel %vm366, %v353, %v356
        %v375 = vsel %vm369, %v362, 920167782
        %v376 = vsel %vm368, %v359, %v375
        %v377 = vsel %vm367, %v374, %v376
        %v378 = vsel %vm366, %v356, %v359
        %v379 = vsel %vm369, %v365, 1326507024
        %v380 = vsel %vm368, %v362, %v379
        %v381 = vsel %vm367, %v378, %v380
        %v382 = vshll.u32 %v342, 8
        %v383 = vmul.u32.u64.compose %v382, %v381
        %v384 = vextract.low.u32 %v383
        %v385 = vextract.high.u32 %v383
        %v386 = vmul.u32.u64.compose %v382, %v377
        %v387 = vextract.low.u32 %v386
        %v388 = vextract.high.u32 %v386
        %v389 = vmul.u32 %v382, %v373
        %v390 = vadd.s32 %v385, %v387
        %vm391 = vc.u32 %v385, %v387
        %v392 = vadd.s32 %v388, 1
        %v393 = vsel %vm391, %v392, %v388
        %v394 = vadd.s32 %v389, %v393
        %v395 = vadd.s32 %v394, 536870912
        %v396 = vshrl.u32 %v395, 30
        %v397 = vshll.u32 %v396, 30
        %v398 = vsub.s32 %v394, %v397
        %vm399 = vcmp.lt.s32.totalorder %v398, 0
        %v400 = vsub.s32 0, %v398
        %v401 = vsel %vm399, %v400, %v398
        %v402 = vclz %v401
        %v403 = vsub.s32 %v402, 2
        %vm404 = vcmp.gt.s32.totalorder 0, %v403
        %v405 = vsel %vm404, 0, %v403
        %v406 = vsub.s32 32, %v405
        %v407 = vshll.u32 %v398, %v405
        %v408 = vshrl.u32 %v390, %v406
        %v409 = vor.u32 %v407, %v408
        %v410 = vsub.s32 4294967266, %v405
        %v411 = vadd.s32 %v410, 127
        %v412 = vshll.u32 %v411, 23
        %v413 = vor.u32 4788187, %v412
        %v414 = vand.u32 2147483647, %v413
        %v416 = vcvt.s32.f32 %v409
        %v417 = vmul.f32 %v416, %v414
        %v418 = vxor.u32 %v417, 2147483648
        %v419 = vsel %vm336, %v418, %v417
        %v420 = vsub.s32 4, %v396
        %v421 = vsel %vm336, %v420, %v396
        %v422 = vsel %vm335, %v223, %v419
        %v423 = vsel %vm335, 0, %v421
        %v424 = vcosq.f32.pop %v422
        %v425 = vsinq.f32.pop %v422
        %vm426 = vweird.f32 %v223
        %v427 = vadd.s32 %v423, 3
        %v428 = vand.u32 %v427, 3
        %vm429 = vcmp.lt.s32.totalorder %v428, 2
        %vm430 = vcmp.eq.s32.totalorder %v428, 0
        %v431 = vxor.u32 %v425, 2147483648
        %v432 = vsel %vm430, %v424, %v431
        %vm433 = vcmp.eq.s32.totalorder %v428, 2
        %v434 = vxor.u32 %v424, 2147483648
        %v435 = vsel %vm433, %v434, %v425
        %v436 = vsel %vm429, %v432, %v435
        %v437 = vsel %vm426, nan, %v436
        %v438 = vand.u32 2147483647, %v224
        %vm439 = vcmp.le.f32.partialorder %v438, 0.7853982
        %vm440 = vcmp.lt.s32.totalorder %v224, 0
        %v441 = vand.u32 %v224, 2139095040
        %v442 = vshrl.u32 %v441, 23
        %v443 = vsub.s32 %v442, 127
        %v444 = vand.u32 2147483647, %v224
        %v445 = vand.u32 %v444, 8388607
        %v446 = vor.u32 %v445, 8388608
        %v447 = vsub.s32 0, %v446
        %v448 = vadd.s32 %v443, 1
        %vm449 = vcmp.gt.s32.totalorder %v448, 0
        %v450 = vsel %vm449, %v448, 0
        %v451 = vshrl.u32 %v450, 5
        %v452 = vand.u32 %v450, 31
        %v453 = vsub.s32 32, %v452
        %v454 = vshrl.u32 683565275, %v453
        %v455 = vshll.u32 683565275, %v452
        %v456 = vshrl.u32 2475754826, %v453
        %v457 = vor.u32 %v455, %v456
        %v458 = vshll.u32 2475754826, %v452
        %v459 = vshrl.u32 2131351028, %v453
        %v460 = vor.u32 %v458, %v459
        %v461 = vshll.u32 2131351028, %v452
        %v462 = vshrl.u32 2102212464, %v453
        %v463 = vor.u32 %v461, %v462
        %v464 = vshll.u32 2102212464, %v452
        %v465 = vshrl.u32 920167782, %v453
        %v466 = vor.u32 %v464, %v465
        %v467 = vshll.u32 920167782, %v452
        %v468 = vshrl.u32 1326507024, %v453
        %v469 = vor.u32 %v467, %v468
        %vm470 = vcmp.lt.s32.totalorder %v451, 1
        %vm471 = vcmp.lt.s32.totalorder %v451, 2
        %vm472 = vcmp.lt.s32.totalorder %v451, 3
        %vm473 = vcmp.lt.s32.totalorder %v451, 4
        %v474 = vsel %vm470, %v454, %v457
        %v475 = vsel %vm473, %v463, 2102212464
        %v476 = vsel %vm472, %v460, %v475
        %v477 = vsel %vm471, %v474, %v476
        %v478 = vsel %vm470, %v457, %v460
        %v479 = vsel %vm473, %v466, 920167782
        %v480 = vsel %vm472, %v463, %v479
        %v481 = vsel %vm471, %v478, %v480
        %v482 = vsel %vm470, %v460, %v463
        %v483 = vsel %vm473, %v469, 1326507024
        %v484 = vsel %vm472, %v466, %v483
        %v485 = vsel %vm471, %v482, %v484
        %v486 = vshll.u32 %v446, 8
        %v487 = vmul.u32.u64.compose %v486, %v485
        %v488 = vextract.low.u32 %v487
        %v489 = vextract.high.u32 %v487
        %v490 = vmul.u32.u64.compose %v486, %v481
        %v491 = vextract.low.u32 %v490
        %v492 = vextract.high.u32 %v490
        %v493 = vmul.u32 %v486, %v477
        %v494 = vadd.s32 %v489, %v491
        %vm495 = vc.u32 %v489, %v491
        %v496 = vadd.s32 %v492, 1
        %v497 = vsel %vm495, %v496, %v492
        %v498 = vadd.s32 %v493, %v497
        %v499 = vadd.s32 %v498, 536870912
        %v500 = vshrl.u32 %v499, 30
        %v501 = vshll.u32 %v500, 30
        %v502 = vsub.s32 %v498, %v501
        %vm503 = vcmp.lt.s32.totalorder %v502, 0
        %v504 = vsub.s32 0, %v502
        %v505 = vsel %vm503, %v504, %v502
        %v506 = vclz %v505
        %v507 = vsub.s32 %v506, 2
        %vm508 = vcmp.gt.s32.totalorder 0, %v507
        %v509 = vsel %vm508, 0, %v507
        %v510 = vsub.s32 32, %v509
        %v511 = vshll.u32 %v502, %v509
        %v512 = vshrl.u32 %v494, %v510
        %v513 = vor.u32 %v511, %v512
        %v514 = vsub.s32 4294967266, %v509
        %v515 = vadd.s32 %v514, 127
        %v516 = vshll.u32 %v515, 23
        %v517 = vor.u32 4788187, %v516
        %v518 = vand.u32 2147483647, %v517
        %v520 = vcvt.s32.f32 %v513
        %v521 = vmul.f32 %v520, %v518
        %v522 = vxor.u32 %v521, 2147483648
        %v523 = vsel %vm440, %v522, %v521
        %v524 = vsub.s32 4, %v500
        %v525 = vsel %vm440, %v524, %v500
        %v526 = vsel %vm439, %v224, %v523
        %v527 = vsel %vm439, 0, %v525
        %v528 = vcosq.f32.pop %v526
        %v529 = vsinq.f32.pop %v526
        %vm530 = vweird.f32 %v224
        %v531 = vadd.s32 %v527, 3
        %v532 = vand.u32 %v531, 3
        %vm533 = vcmp.lt.s32.totalorder %v532, 2
        %vm534 = vcmp.eq.s32.totalorder %v532, 0
        %v535 = vxor.u32 %v529, 2147483648
        %v536 = vsel %vm534, %v528, %v535
        %vm537 = vcmp.eq.s32.totalorder %v532, 2
        %v538 = vxor.u32 %v528, 2147483648
        %v539 = vsel %vm537, %v538, %v529
        %v540 = vsel %vm533, %v536, %v539
        %v541 = vsel %vm530, nan, %v540
        %v542 = vand.u32 2147483647, %v225
        %vm543 = vcmp.le.f32.partialorder %v542, 0.7853982
        %vm544 = vcmp.lt.s32.totalorder %v225, 0
        %v545 = vand.u32 %v225, 2139095040
        %v546 = vshrl.u32 %v545, 23
        %v547 = vsub.s32 %v546, 127
        %v548 = vand.u32 2147483647, %v225
        %v549 = vand.u32 %v548, 8388607
        %v550 = vor.u32 %v549, 8388608
        %v551 = vsub.s32 0, %v550
        %v552 = vadd.s32 %v547, 1
        %vm553 = vcmp.gt.s32.totalorder %v552, 0
        %v554 = vsel %vm553, %v552, 0
        %v555 = vshrl.u32 %v554, 5
        %v556 = vand.u32 %v554, 31
        %v557 = vsub.s32 32, %v556
        %v558 = vshrl.u32 683565275, %v557
        %v559 = vshll.u32 683565275, %v556
        %v560 = vshrl.u32 2475754826, %v557
        %v561 = vor.u32 %v559, %v560
        %v562 = vshll.u32 2475754826, %v556
        %v563 = vshrl.u32 2131351028, %v557
        %v564 = vor.u32 %v562, %v563
        %v565 = vshll.u32 2131351028, %v556
        %v566 = vshrl.u32 2102212464, %v557
        %v567 = vor.u32 %v565, %v566
        %v568 = vshll.u32 2102212464, %v556
        %v569 = vshrl.u32 920167782, %v557
        %v570 = vor.u32 %v568, %v569
        %v571 = vshll.u32 920167782, %v556
        %v572 = vshrl.u32 1326507024, %v557
        %v573 = vor.u32 %v571, %v572
        %vm574 = vcmp.lt.s32.totalorder %v555, 1
        %vm575 = vcmp.lt.s32.totalorder %v555, 2
        %vm576 = vcmp.lt.s32.totalorder %v555, 3
        %vm577 = vcmp.lt.s32.totalorder %v555, 4
        %v578 = vsel %vm574, %v558, %v561
        %v579 = vsel %vm577, %v567, 2102212464
        %v580 = vsel %vm576, %v564, %v579
        %v581 = vsel %vm575, %v578, %v580
        %v582 = vsel %vm574, %v561, %v564
        %v583 = vsel %vm577, %v570, 920167782
        %v584 = vsel %vm576, %v567, %v583
        %v585 = vsel %vm575, %v582, %v584
        %v586 = vsel %vm574, %v564, %v567
        %v587 = vsel %vm577, %v573, 1326507024
        %v588 = vsel %vm576, %v570, %v587
        %v589 = vsel %vm575, %v586, %v588
        %v590 = vshll.u32 %v550, 8
        %v591 = vmul.u32.u64.compose %v590, %v589
        %v592 = vextract.low.u32 %v591
        %v593 = vextract.high.u32 %v591
        %v594 = vmul.u32.u64.compose %v590, %v585
        %v595 = vextract.low.u32 %v594
        %v596 = vextract.high.u32 %v594
        %v597 = vmul.u32 %v590, %v581
        %v598 = vadd.s32 %v593, %v595
        %vm599 = vc.u32 %v593, %v595
        %v600 = vadd.s32 %v596, 1
        %v601 = vsel %vm599, %v600, %v596
        %v602 = vadd.s32 %v597, %v601
        %v603 = vadd.s32 %v602, 536870912
        %v604 = vshrl.u32 %v603, 30
        %v605 = vshll.u32 %v604, 30
        %v606 = vsub.s32 %v602, %v605
        %vm607 = vcmp.lt.s32.totalorder %v606, 0
        %v608 = vsub.s32 0, %v606
        %v609 = vsel %vm607, %v608, %v606
        %v610 = vclz %v609
        %v611 = vsub.s32 %v610, 2
        %vm612 = vcmp.gt.s32.totalorder 0, %v611
        %v613 = vsel %vm612, 0, %v611
        %v614 = vsub.s32 32, %v613
        %v615 = vshll.u32 %v606, %v613
        %v616 = vshrl.u32 %v598, %v614
        %v617 = vor.u32 %v615, %v616
        %v618 = vsub.s32 4294967266, %v613
        %v619 = vadd.s32 %v618, 127
        %v620 = vshll.u32 %v619, 23
        %v621 = vor.u32 4788187, %v620
        %v622 = vand.u32 2147483647, %v621
        %v624 = vcvt.s32.f32 %v617
        %v625 = vmul.f32 %v624, %v622
        %v626 = vxor.u32 %v625, 2147483648
        %v627 = vsel %vm544, %v626, %v625
        %v628 = vsub.s32 4, %v604
        %v629 = vsel %vm544, %v628, %v604
        %v630 = vsel %vm543, %v225, %v627
        %v631 = vsel %vm543, 0, %v629
        %v632 = vcosq.f32.pop %v630
        %v633 = vsinq.f32.pop %v630
        %vm634 = vweird.f32 %v225
        %v635 = vadd.s32 %v631, 3
        %v636 = vand.u32 %v635, 3
        %vm637 = vcmp.lt.s32.totalorder %v636, 2
        %vm638 = vcmp.eq.s32.totalorder %v636, 0
        %v639 = vxor.u32 %v633, 2147483648
        %v640 = vsel %vm638, %v632, %v639
        %vm641 = vcmp.eq.s32.totalorder %v636, 2
        %v642 = vxor.u32 %v632, 2147483648
        %v643 = vsel %vm641, %v642, %v633
        %v644 = vsel %vm637, %v640, %v643
        %v645 = vsel %vm634, nan, %v644
        %v646 = vand.u32 2147483647, %v226
        %vm647 = vcmp.le.f32.partialorder %v646, 0.7853982
        %vm648 = vcmp.lt.s32.totalorder %v226, 0
        %v649 = vand.u32 %v226, 2139095040
        %v650 = vshrl.u32 %v649, 23
        %v651 = vsub.s32 %v650, 127
        %v652 = vand.u32 2147483647, %v226
        %v653 = vand.u32 %v652, 8388607
        %v654 = vor.u32 %v653, 8388608
        %v655 = vsub.s32 0, %v654
        %v656 = vadd.s32 %v651, 1
        %vm657 = vcmp.gt.s32.totalorder %v656, 0
        %v658 = vsel %vm657, %v656, 0
        %v659 = vshrl.u32 %v658, 5
        %v660 = vand.u32 %v658, 31
        %v661 = vsub.s32 32, %v660
        %v662 = vshrl.u32 683565275, %v661
        %v663 = vshll.u32 683565275, %v660
        %v664 = vshrl.u32 2475754826, %v661
        %v665 = vor.u32 %v663, %v664
        %v666 = vshll.u32 2475754826, %v660
        %v667 = vshrl.u32 2131351028, %v661
        %v668 = vor.u32 %v666, %v667
        %v669 = vshll.u32 2131351028, %v660
        %v670 = vshrl.u32 2102212464, %v661
        %v671 = vor.u32 %v669, %v670
        %v672 = vshll.u32 2102212464, %v660
        %v673 = vshrl.u32 920167782, %v661
        %v674 = vor.u32 %v672, %v673
        %v675 = vshll.u32 920167782, %v660
        %v676 = vshrl.u32 1326507024, %v661
        %v677 = vor.u32 %v675, %v676
        %vm678 = vcmp.lt.s32.totalorder %v659, 1
        %vm679 = vcmp.lt.s32.totalorder %v659, 2
        %vm680 = vcmp.lt.s32.totalorder %v659, 3
        %vm681 = vcmp.lt.s32.totalorder %v659, 4
        %v682 = vsel %vm678, %v662, %v665
        %v683 = vsel %vm681, %v671, 2102212464
        %v684 = vsel %vm680, %v668, %v683
        %v685 = vsel %vm679, %v682, %v684
        %v686 = vsel %vm678, %v665, %v668
        %v687 = vsel %vm681, %v674, 920167782
        %v688 = vsel %vm680, %v671, %v687
        %v689 = vsel %vm679, %v686, %v688
        %v690 = vsel %vm678, %v668, %v671
        %v691 = vsel %vm681, %v677, 1326507024
        %v692 = vsel %vm680, %v674, %v691
        %v693 = vsel %vm679, %v690, %v692
        %v694 = vshll.u32 %v654, 8
        %v695 = vmul.u32.u64.compose %v694, %v693
        %v696 = vextract.low.u32 %v695
        %v697 = vextract.high.u32 %v695
        %v698 = vmul.u32.u64.compose %v694, %v689
        %v699 = vextract.low.u32 %v698
        %v700 = vextract.high.u32 %v698
        %v701 = vmul.u32 %v694, %v685
        %v702 = vadd.s32 %v697, %v699
        %vm703 = vc.u32 %v697, %v699
        %v704 = vadd.s32 %v700, 1
        %v705 = vsel %vm703, %v704, %v700
        %v706 = vadd.s32 %v701, %v705
        %v707 = vadd.s32 %v706, 536870912
        %v708 = vshrl.u32 %v707, 30
        %v709 = vshll.u32 %v708, 30
        %v710 = vsub.s32 %v706, %v709
        %vm711 = vcmp.lt.s32.totalorder %v710, 0
        %v712 = vsub.s32 0, %v710
        %v713 = vsel %vm711, %v712, %v710
        %v714 = vclz %v713
        %v715 = vsub.s32 %v714, 2
        %vm716 = vcmp.gt.s32.totalorder 0, %v715
        %v717 = vsel %vm716, 0, %v715
        %v718 = vsub.s32 32, %v717
        %v719 = vshll.u32 %v710, %v717
        %v720 = vshrl.u32 %v702, %v718
        %v721 = vor.u32 %v719, %v720
        %v722 = vsub.s32 4294967266, %v717
        %v723 = vadd.s32 %v722, 127
        %v724 = vshll.u32 %v723, 23
        %v725 = vor.u32 4788187, %v724
        %v726 = vand.u32 2147483647, %v725
        %v728 = vcvt.s32.f32 %v721
        %v729 = vmul.f32 %v728, %v726
        %v730 = vxor.u32 %v729, 2147483648
        %v731 = vsel %vm648, %v730, %v729
        %v732 = vsub.s32 4, %v708
        %v733 = vsel %vm648, %v732, %v708
        %v734 = vsel %vm647, %v226, %v731
        %v735 = vsel %vm647, 0, %v733
        %v736 = vcosq.f32.pop %v734
        %v737 = vsinq.f32.pop %v734
        %vm738 = vweird.f32 %v226
        %v739 = vadd.s32 %v735, 3
        %v740 = vand.u32 %v739, 3
        %vm741 = vcmp.lt.s32.totalorder %v740, 2
        %vm742 = vcmp.eq.s32.totalorder %v740, 0
        %v743 = vxor.u32 %v737, 2147483648
        %v744 = vsel %vm742, %v736, %v743
        %vm745 = vcmp.eq.s32.totalorder %v740, 2
        %v746 = vxor.u32 %v736, 2147483648
        %v747 = vsel %vm745, %v746, %v737
        %v748 = vsel %vm741, %v744, %v747
        %v749 = vsel %vm738, nan, %v748
        %v750 = vand.u32 2147483647, %v227
        %vm751 = vcmp.le.f32.partialorder %v750, 0.7853982
        %vm752 = vcmp.lt.s32.totalorder %v227, 0
        %v753 = vand.u32 %v227, 2139095040
        %v754 = vshrl.u32 %v753, 23
        %v755 = vsub.s32 %v754, 127
        %v756 = vand.u32 2147483647, %v227
        %v757 = vand.u32 %v756, 8388607
        %v758 = vor.u32 %v757, 8388608
        %v759 = vsub.s32 0, %v758
        %v760 = vadd.s32 %v755, 1
        %vm761 = vcmp.gt.s32.totalorder %v760, 0
        %v762 = vsel %vm761, %v760, 0
        %v763 = vshrl.u32 %v762, 5
        %v764 = vand.u32 %v762, 31
        %v765 = vsub.s32 32, %v764
        %v766 = vshrl.u32 683565275, %v765
        %v767 = vshll.u32 683565275, %v764
        %v768 = vshrl.u32 2475754826, %v765
        %v769 = vor.u32 %v767, %v768
        %v770 = vshll.u32 2475754826, %v764
        %v771 = vshrl.u32 2131351028, %v765
        %v772 = vor.u32 %v770, %v771
        %v773 = vshll.u32 2131351028, %v764
        %v774 = vshrl.u32 2102212464, %v765
        %v775 = vor.u32 %v773, %v774
        %v776 = vshll.u32 2102212464, %v764
        %v777 = vshrl.u32 920167782, %v765
        %v778 = vor.u32 %v776, %v777
        %v779 = vshll.u32 920167782, %v764
        %v780 = vshrl.u32 1326507024, %v765
        %v781 = vor.u32 %v779, %v780
        %vm782 = vcmp.lt.s32.totalorder %v763, 1
        %vm783 = vcmp.lt.s32.totalorder %v763, 2
        %vm784 = vcmp.lt.s32.totalorder %v763, 3
        %vm785 = vcmp.lt.s32.totalorder %v763, 4
        %v786 = vsel %vm782, %v766, %v769
        %v787 = vsel %vm785, %v775, 2102212464
        %v788 = vsel %vm784, %v772, %v787
        %v789 = vsel %vm783, %v786, %v788
        %v790 = vsel %vm782, %v769, %v772
        %v791 = vsel %vm785, %v778, 920167782
        %v792 = vsel %vm784, %v775, %v791
        %v793 = vsel %vm783, %v790, %v792
        %v794 = vsel %vm782, %v772, %v775
        %v795 = vsel %vm785, %v781, 1326507024
        %v796 = vsel %vm784, %v778, %v795
        %v797 = vsel %vm783, %v794, %v796
        %v798 = vshll.u32 %v758, 8
        %v799 = vmul.u32.u64.compose %v798, %v797
        %v800 = vextract.low.u32 %v799
        %v801 = vextract.high.u32 %v799
        %v802 = vmul.u32.u64.compose %v798, %v793
        %v803 = vextract.low.u32 %v802
        %v804 = vextract.high.u32 %v802
        %v805 = vmul.u32 %v798, %v789
        %v806 = vadd.s32 %v801, %v803
        %vm807 = vc.u32 %v801, %v803
        %v808 = vadd.s32 %v804, 1
        %v809 = vsel %vm807, %v808, %v804
        %v810 = vadd.s32 %v805, %v809
        %v811 = vadd.s32 %v810, 536870912
        %v812 = vshrl.u32 %v811, 30
        %v813 = vshll.u32 %v812, 30
        %v814 = vsub.s32 %v810, %v813
        %vm815 = vcmp.lt.s32.totalorder %v814, 0
        %v816 = vsub.s32 0, %v814
        %v817 = vsel %vm815, %v816, %v814
        %v818 = vclz %v817
        %v819 = vsub.s32 %v818, 2
        %vm820 = vcmp.gt.s32.totalorder 0, %v819
        %v821 = vsel %vm820, 0, %v819
        %v822 = vsub.s32 32, %v821
        %v823 = vshll.u32 %v814, %v821
        %v824 = vshrl.u32 %v806, %v822
        %v825 = vor.u32 %v823, %v824
        %v826 = vsub.s32 4294967266, %v821
        %v827 = vadd.s32 %v826, 127
        %v828 = vshll.u32 %v827, 23
        %v829 = vor.u32 4788187, %v828
        %v830 = vand.u32 2147483647, %v829
        %v832 = vcvt.s32.f32 %v825
        %v833 = vmul.f32 %v832, %v830
        %v834 = vxor.u32 %v833, 2147483648
        %v835 = vsel %vm752, %v834, %v833
        %v836 = vsub.s32 4, %v812
        %v837 = vsel %vm752, %v836, %v812
        %v838 = vsel %vm751, %v227, %v835
        %v839 = vsel %vm751, 0, %v837
        %v840 = vcosq.f32.pop %v838
        %v841 = vsinq.f32.pop %v838
        %vm842 = vweird.f32 %v227
        %v843 = vadd.s32 %v839, 3
        %v844 = vand.u32 %v843, 3
        %vm845 = vcmp.lt.s32.totalorder %v844, 2
        %vm846 = vcmp.eq.s32.totalorder %v844, 0
        %v847 = vxor.u32 %v841, 2147483648
        %v848 = vsel %vm846, %v840, %v847
        %vm849 = vcmp.eq.s32.totalorder %v844, 2
        %v850 = vxor.u32 %v840, 2147483648
        %v851 = vsel %vm849, %v850, %v841
        %v852 = vsel %vm845, %v848, %v851
        %v853 = vsel %vm842, nan, %v852
        %v854 = vand.u32 2147483647, %v228
        %vm855 = vcmp.le.f32.partialorder %v854, 0.7853982
        %vm856 = vcmp.lt.s32.totalorder %v228, 0
        %v857 = vand.u32 %v228, 2139095040
        %v858 = vshrl.u32 %v857, 23
        %v859 = vsub.s32 %v858, 127
        %v860 = vand.u32 2147483647, %v228
        %v861 = vand.u32 %v860, 8388607
        %v862 = vor.u32 %v861, 8388608
        %v863 = vsub.s32 0, %v862
        %v864 = vadd.s32 %v859, 1
        %vm865 = vcmp.gt.s32.totalorder %v864, 0
        %v866 = vsel %vm865, %v864, 0
        %v867 = vshrl.u32 %v866, 5
        %v868 = vand.u32 %v866, 31
        %v869 = vsub.s32 32, %v868
        %v870 = vshrl.u32 683565275, %v869
        %v871 = vshll.u32 683565275, %v868
        %v872 = vshrl.u32 2475754826, %v869
        %v873 = vor.u32 %v871, %v872
        %v874 = vshll.u32 2475754826, %v868
        %v875 = vshrl.u32 2131351028, %v869
        %v876 = vor.u32 %v874, %v875
        %v877 = vshll.u32 2131351028, %v868
        %v878 = vshrl.u32 2102212464, %v869
        %v879 = vor.u32 %v877, %v878
        %v880 = vshll.u32 2102212464, %v868
        %v881 = vshrl.u32 920167782, %v869
        %v882 = vor.u32 %v880, %v881
        %v883 = vshll.u32 920167782, %v868
        %v884 = vshrl.u32 1326507024, %v869
        %v885 = vor.u32 %v883, %v884
        %vm886 = vcmp.lt.s32.totalorder %v867, 1
        %vm887 = vcmp.lt.s32.totalorder %v867, 2
        %vm888 = vcmp.lt.s32.totalorder %v867, 3
        %vm889 = vcmp.lt.s32.totalorder %v867, 4
        %v890 = vsel %vm886, %v870, %v873
        %v891 = vsel %vm889, %v879, 2102212464
        %v892 = vsel %vm888, %v876, %v891
        %v893 = vsel %vm887, %v890, %v892
        %v894 = vsel %vm886, %v873, %v876
        %v895 = vsel %vm889, %v882, 920167782
        %v896 = vsel %vm888, %v879, %v895
        %v897 = vsel %vm887, %v894, %v896
        %v898 = vsel %vm886, %v876, %v879
        %v899 = vsel %vm889, %v885, 1326507024
        %v900 = vsel %vm888, %v882, %v899
        %v901 = vsel %vm887, %v898, %v900
        %v902 = vshll.u32 %v862, 8
        %v903 = vmul.u32.u64.compose %v902, %v901
        %v904 = vextract.low.u32 %v903
        %v905 = vextract.high.u32 %v903
        %v906 = vmul.u32.u64.compose %v902, %v897
        %v907 = vextract.low.u32 %v906
        %v908 = vextract.high.u32 %v906
        %v909 = vmul.u32 %v902, %v893
        %v910 = vadd.s32 %v905, %v907
        %vm911 = vc.u32 %v905, %v907
        %v912 = vadd.s32 %v908, 1
        %v913 = vsel %vm911, %v912, %v908
        %v914 = vadd.s32 %v909, %v913
        %v915 = vadd.s32 %v914, 536870912
        %v916 = vshrl.u32 %v915, 30
        %v917 = vshll.u32 %v916, 30
        %v918 = vsub.s32 %v914, %v917
        %vm919 = vcmp.lt.s32.totalorder %v918, 0
        %v920 = vsub.s32 0, %v918
        %v921 = vsel %vm919, %v920, %v918
        %v922 = vclz %v921
        %v923 = vsub.s32 %v922, 2
        %vm924 = vcmp.gt.s32.totalorder 0, %v923
        %v925 = vsel %vm924, 0, %v923
        %v926 = vsub.s32 32, %v925
        %v927 = vshll.u32 %v918, %v925
        %v928 = vshrl.u32 %v910, %v926
        %v929 = vor.u32 %v927, %v928
        %v930 = vsub.s32 4294967266, %v925
        %v931 = vadd.s32 %v930, 127
        %v932 = vshll.u32 %v931, 23
        %v933 = vor.u32 4788187, %v932
        %v934 = vand.u32 2147483647, %v933
        %v936 = vcvt.s32.f32 %v929
        %v937 = vmul.f32 %v936, %v934
        %v938 = vxor.u32 %v937, 2147483648
        %v939 = vsel %vm856, %v938, %v937
        %v940 = vsub.s32 4, %v916
        %v941 = vsel %vm856, %v940, %v916
        %v942 = vsel %vm855, %v228, %v939
        %v943 = vsel %vm855, 0, %v941
        %v944 = vcosq.f32.pop %v942
        %v945 = vsinq.f32.pop %v942
        %vm946 = vweird.f32 %v228
        %v947 = vadd.s32 %v943, 3
        %v948 = vand.u32 %v947, 3
        %vm949 = vcmp.lt.s32.totalorder %v948, 2
        %vm950 = vcmp.eq.s32.totalorder %v948, 0
        %v951 = vxor.u32 %v945, 2147483648
        %v952 = vsel %vm950, %v944, %v951
        %vm953 = vcmp.eq.s32.totalorder %v948, 2
        %v954 = vxor.u32 %v944, 2147483648
        %v955 = vsel %vm953, %v954, %v945
        %v956 = vsel %vm949, %v952, %v955
        %v957 = vsel %vm946, nan, %v956
        %v958 = vand.u32 2147483647, %v229
        %vm959 = vcmp.le.f32.partialorder %v958, 0.7853982
        %vm960 = vcmp.lt.s32.totalorder %v229, 0
        %v961 = vand.u32 %v229, 2139095040
        %v962 = vshrl.u32 %v961, 23
        %v963 = vsub.s32 %v962, 127
        %v964 = vand.u32 2147483647, %v229
        %v965 = vand.u32 %v964, 8388607
        %v966 = vor.u32 %v965, 8388608
        %v967 = vsub.s32 0, %v966
        %v968 = vadd.s32 %v963, 1
        %vm969 = vcmp.gt.s32.totalorder %v968, 0
        %v970 = vsel %vm969, %v968, 0
        %v971 = vshrl.u32 %v970, 5
        %v972 = vand.u32 %v970, 31
        %v973 = vsub.s32 32, %v972
        %v974 = vshrl.u32 683565275, %v973
        %v975 = vshll.u32 683565275, %v972
        %v976 = vshrl.u32 2475754826, %v973
        %v977 = vor.u32 %v975, %v976
        %v978 = vshll.u32 2475754826, %v972
        %v979 = vshrl.u32 2131351028, %v973
        %v980 = vor.u32 %v978, %v979
        %v981 = vshll.u32 2131351028, %v972
        %v982 = vshrl.u32 2102212464, %v973
        %v983 = vor.u32 %v981, %v982
        %v984 = vshll.u32 2102212464, %v972
        %v985 = vshrl.u32 920167782, %v973
        %v986 = vor.u32 %v984, %v985
        %v987 = vshll.u32 920167782, %v972
        %v988 = vshrl.u32 1326507024, %v973
        %v989 = vor.u32 %v987, %v988
        %vm990 = vcmp.lt.s32.totalorder %v971, 1
        %vm991 = vcmp.lt.s32.totalorder %v971, 2
        %vm992 = vcmp.lt.s32.totalorder %v971, 3
        %vm993 = vcmp.lt.s32.totalorder %v971, 4
        %v994 = vsel %vm990, %v974, %v977
        %v995 = vsel %vm993, %v983, 2102212464
        %v996 = vsel %vm992, %v980, %v995
        %v997 = vsel %vm991, %v994, %v996
        %v998 = vsel %vm990, %v977, %v980
        %v999 = vsel %vm993, %v986, 920167782
        %v1000 = vsel %vm992, %v983, %v999
        %v1001 = vsel %vm991, %v998, %v1000
        %v1002 = vsel %vm990, %v980, %v983
        %v1003 = vsel %vm993, %v989, 1326507024
        %v1004 = vsel %vm992, %v986, %v1003
        %v1005 = vsel %vm991, %v1002, %v1004
        %v1006 = vshll.u32 %v966, 8
        %v1007 = vmul.u32.u64.compose %v1006, %v1005
        %v1008 = vextract.low.u32 %v1007
        %v1009 = vextract.high.u32 %v1007
        %v1010 = vmul.u32.u64.compose %v1006, %v1001
        %v1011 = vextract.low.u32 %v1010
        %v1012 = vextract.high.u32 %v1010
        %v1013 = vmul.u32 %v1006, %v997
        %v1014 = vadd.s32 %v1009, %v1011
        %vm1015 = vc.u32 %v1009, %v1011
        %v1016 = vadd.s32 %v1012, 1
        %v1017 = vsel %vm1015, %v1016, %v1012
        %v1018 = vadd.s32 %v1013, %v1017
        %v1019 = vadd.s32 %v1018, 536870912
        %v1020 = vshrl.u32 %v1019, 30
        %v1021 = vshll.u32 %v1020, 30
        %v1022 = vsub.s32 %v1018, %v1021
        %vm1023 = vcmp.lt.s32.totalorder %v1022, 0
        %v1024 = vsub.s32 0, %v1022
        %v1025 = vsel %vm1023, %v1024, %v1022
        %v1026 = vclz %v1025
        %v1027 = vsub.s32 %v1026, 2
        %vm1028 = vcmp.gt.s32.totalorder 0, %v1027
        %v1029 = vsel %vm1028, 0, %v1027
        %v1030 = vsub.s32 32, %v1029
        %v1031 = vshll.u32 %v1022, %v1029
        %v1032 = vshrl.u32 %v1014, %v1030
        %v1033 = vor.u32 %v1031, %v1032
        %v1034 = vsub.s32 4294967266, %v1029
        %v1035 = vadd.s32 %v1034, 127
        %v1036 = vshll.u32 %v1035, 23
        %v1037 = vor.u32 4788187, %v1036
        %v1038 = vand.u32 2147483647, %v1037
        %v1040 = vcvt.s32.f32 %v1033
        %v1041 = vmul.f32 %v1040, %v1038
        %v1042 = vxor.u32 %v1041, 2147483648
        %v1043 = vsel %vm960, %v1042, %v1041
        %v1044 = vsub.s32 4, %v1020
        %v1045 = vsel %vm960, %v1044, %v1020
        %v1046 = vsel %vm959, %v229, %v1043
        %v1047 = vsel %vm959, 0, %v1045
        %v1048 = vcosq.f32.pop %v1046
        %v1049 = vsinq.f32.pop %v1046
        %vm1050 = vweird.f32 %v229
        %v1051 = vadd.s32 %v1047, 3
        %v1052 = vand.u32 %v1051, 3
        %vm1053 = vcmp.lt.s32.totalorder %v1052, 2
        %vm1054 = vcmp.eq.s32.totalorder %v1052, 0
        %v1055 = vxor.u32 %v1049, 2147483648
        %v1056 = vsel %vm1054, %v1048, %v1055
        %vm1057 = vcmp.eq.s32.totalorder %v1052, 2
        %v1058 = vxor.u32 %v1048, 2147483648
        %v1059 = vsel %vm1057, %v1058, %v1049
        %v1060 = vsel %vm1053, %v1056, %v1059
        %v1061 = vsel %vm1050, nan, %v1060
        %1062 = vst [vmem:[%s148] sm:$0xff] %v333
        %1063 = vst [vmem:[%s148 + $0x8] sm:$0xff] %v437
        %1064 = vst [vmem:[%s148 + $0x10] sm:$0xff] %v541
        %1065 = vst [vmem:[%s148 + $0x18] sm:$0xff] %v645
        %1066 = vst [vmem:[%s148 + $0x20] sm:$0xff] %v749
        %1067 = vst [vmem:[%s148 + $0x28] sm:$0xff] %v853
        %1068 = vst [vmem:[%s148 + $0x30] sm:$0xff] %v957
        %1069 = vst [vmem:[%s148 + $0x38] sm:$0xff] %v1061
        %s1070 = sand.u32 %s88, 1
        %s1071 = scalar_lea.sflag [#allocation3], %s1070
        %s1072 = sand.u32 %s88, 1
        %s1073 = smul.addr %s1072, 64
        %s1074 = scalar_lea.vmem [#allocation2], %s1073
        // Predicated region
        $region33: #{tpu_custom_call.1} parent=31 // pred_check
          %p1075 = pneg %p98
        $region34: #{tpu_custom_call.1} parent=31 // pred_check_branch
          %1077 = sbr.rel (%p1075) target = $region36
        $region35: #{tpu_custom_call.1} parent=31 // pred_region
          %s1078 = smul.u32 8, %s17
          %s1080 = ssub.s32 1024, 1024
          %1081 = vsyncadd %s1071, %s1080
          %s1082 = smul.addr %s1078, 128
          %s1083 = scalar_lea.hbm %s3, %s1082
          %s1084 = sshll.u32 %s1074, 4
          %s1085 = int_to_ptr.vmem [resolvable:$true] %s1084
          %1090 = dma.vmem_to_hbm [thread:$0]  %s1085, 1024, %s1083, %s1071, 128, 128, 8
        $region36: #{tpu_custom_call.1} parent=31 // pred_fallthru
          _
      $region32: #{tpu_custom_call.1} parent=5 // pred_fallthru
        _
      %p1091 = scmp.le.s32.totalorder 2, %s12
      // Predicated region
      $region37: #{tpu_custom_call.1} parent=5 // pred_check
        %p1092 = pneg %p1091
      $region38: #{tpu_custom_call.1} parent=5 // pred_check_branch
        %1094 = sbr.rel (%p1092) target = $region40
      $region39: #{tpu_custom_call.1} parent=5 // pred_region
        %s1095 = ssub.s32 %s12, 2
        // Predicated region
        $region41: #{tpu_custom_call.1} parent=39 // pred_check
          %p1096 = pneg %p104
        $region42: #{tpu_custom_call.1} parent=39 // pred_check_branch
          %1098 = sbr.rel (%p1096) target = $region44
        $region43: #{tpu_custom_call.1} parent=39 // pred_region
          %s1099 = sand.u32 %s89, 1
          %s1100 = scalar_lea.sflag [#allocation3], %s1099
          %s1101 = sand.u32 %s89, 1
          %s1102 = smul.addr %s1101, 64
          %s1103 = scalar_lea.vmem [#allocation2], %s1102
          %1104 = dma.done %s1100, 1024
        $region44: #{tpu_custom_call.1} parent=39 // pred_fallthru
          _
      $region40: #{tpu_custom_call.1} parent=5 // pred_fallthru
        _
    $region6: #{tpu_custom_call.1} parent=1 // loop_footer
      %s16 = sadd.s32 1, %s12
    $region7: #{tpu_custom_call.1} parent=1 // loop_footer_branch
      %11 = sbr.rel target = $region3
    $region8: #{tpu_custom_call.1} parent=1 // loop_exit
      _
    %1105 = vsyncpa [#allocation3], 1
    %s1106 = scalar_lea.sflag [#allocation3], 1
    %1107 = vsyncpa %s1106, 1

</llo_original>
